<compile_context>
chip_gen: v5e
topology: v5e:2x2
jax: 0.10.0
libtpu: 0.0.40
codegen_flags: <defaults>
</compile_context>

<pallas_src>
import functools
import math

import jax
import jax.numpy as jnp
from jax.experimental import pallas as pl
from jax.experimental.pallas import tpu as pltpu


_INV_SQRT2 = 1.0 / math.sqrt(2.0)
_SQRT_2_OVER_PI = math.sqrt(2.0 / math.pi)


def _apply_act(h, act, gelu_approx=False):
    if act == "gelu":
        if gelu_approx:
            # tanh-approx GELU: runs on the EUP slot instead of a long VALU
            # erf polynomial.  NOT bit-identical to torch's default gelu.
            return 0.5 * h * (1.0 + jnp.tanh(
                _SQRT_2_OVER_PI * (h + 0.044715 * h * h * h)))
        # exact erf-based GELU (torch.nn.functional.gelu default)
        return 0.5 * h * (1.0 + jax.lax.erf(h * _INV_SQRT2))
    if act == "tanh":
        return jnp.tanh(h)
    if act == "relu":
        return jnp.maximum(h, 0.0)
    raise ValueError(f"unknown activation {act}")


def _fused_mlp_kernel(x_ref, w_ref, b_ref, o_ref, *, acts, in_dim, mxu_dtype,
                      gelu_approx):
    """Whole MLP on one batch tile; intermediates never leave VMEM.

    x_ref: (TB, din)    f32        unpadded feature dim (din == full array dim)
    w_ref: (L, Dp, Dp)  mxu_dtype  stacked zero-padded weights (din, dout), resident
    b_ref: (L, 1, Dp)   f32        stacked zero-padded biases, resident
    o_ref: (TB, Dp)     f32        lane-dense (Dp = 128*k) output tile
    """
    h = x_ref[...]                                   # f32 activations throughout
    for l, act in enumerate(acts):                   # static, unrolled layer loop
        # layer 0 contracts over the true input width; later layers use the
        # full padded square weight (zero rows/cols are harmless).
        w = w_ref[l, :in_dim, :] if l == 0 else w_ref[l]
        h = jnp.dot(h.astype(mxu_dtype), w, preferred_element_type=jnp.float32)
        h = h + b_ref[l]                             # (1, Dp) broadcast, f32
        h = _apply_act(h, act, gelu_approx)
    o_ref[...] = h


def _fused_mlp_call(x, w_all, b_all, *, acts, tb, mxu_dtype, gelu_approx):
    b_pad, in_dim = x.shape
    n_layers, d_pad, _ = w_all.shape
    kernel = functools.partial(
        _fused_mlp_kernel, acts=tuple(acts), in_dim=in_dim,
        mxu_dtype=mxu_dtype, gelu_approx=gelu_approx)
    return pl.pallas_call(
        kernel,
        out_shape=jax.ShapeDtypeStruct((b_pad, d_pad), jnp.float32),
        grid_spec=pltpu.PrefetchScalarGridSpec(
            num_scalar_prefetch=0,
            grid=(b_pad // tb,),
            in_specs=[
                # unpadded input: last block dim equals full array dim (legal)
                pl.BlockSpec((tb, in_dim), lambda i: (i, 0)),
                # weights/biases resident across the batch grid
                pl.BlockSpec((n_layers, d_pad, d_pad), lambda i: (0, 0, 0)),
                pl.BlockSpec((n_layers, 1, d_pad), lambda i: (0, 0, 0)),
            ],
            out_specs=pl.BlockSpec((tb, d_pad), lambda i: (i, 0)),
        ),
        compiler_params=pltpu.CompilerParams(
            dimension_semantics=("parallel",),       # 2 TCs on v7x
            vmem_limit_bytes=32 * 1024 * 1024,       # safe on v7x's 64 MiB VMEM
        ),
    )(x, w_all, b_all)


@functools.partial(
    jax.jit,
    static_argnames=("acts", "tb", "b_pad", "out_dim", "mxu_dtype",
                     "gelu_approx", "slice_output"))
def _forward_jit(x, w_all, b_all, *, acts, tb, b_pad, out_dim, mxu_dtype,
                 gelu_approx, slice_output):
    # batch padding + final slice are fused into this single jit dispatch
    batch = x.shape[0]
    x = x.astype(jnp.float32)
    if batch != b_pad:
        x = jnp.pad(x, ((0, b_pad - batch), (0, 0)))
    y_pad = _fused_mlp_call(x, w_all, b_all, acts=acts, tb=tb,
                            mxu_dtype=mxu_dtype, gelu_approx=gelu_approx)
    if slice_output:
        return y_pad[:batch, :out_dim]
    return y_pad                                     # lane-dense padded result


def _round_up(v, m):
    return ((v + m - 1) // m) * m


def _cdiv(a, b):
    return (a + b - 1) // b


def _next_pow2(n):
    return 1 << max(n - 1, 0).bit_length() if n > 1 else 1


def _choose_tiling(batch, max_tile=1024):
    """Pick (batch_tile, padded_batch).

    * tile is 8-sublane aligned and capped at `max_tile` (big tiles amortize
      the ~0.35 us/step pipeline overhead),
    * >= 2 grid steps whenever batch > 8 so v7x's second TensorCore gets work,
    * tile count is bucketed (pow2 up to 8, then multiples of 8) to bound the
      number of distinct kernel shapes that ever get compiled.
    """
    b_min = _round_up(max(batch, 8), 8)
    if b_min <= 8:
        tb = 8
    else:
        tb = min(max_tile, _round_up(_cdiv(b_min, 2), 8))
    n_tiles = _cdiv(b_min, tb)
    n_tiles = _next_pow2(n_tiles) if n_tiles <= 8 else _round_up(n_tiles, 8)
    return tb, tb * n_tiles


class FineTuneModelPallas:
    """JAX/Pallas equivalent of FineTuneModel's forward.

    `dims` is the list of feature sizes [d0, d1, ..., dN] implied by
    FineTuneModel.__init__ (new first Linear, middle layers of the core
    model, new last Linear to `output_dimension`).  `activation` is the core
    model's activation (GELU in cycleik).
    """

    def __init__(self, dims, activation="gelu", key=None,
                 mxu_dtype=jnp.bfloat16, approximate_gelu=False,
                 max_batch_tile=1024):
        if key is None:
            key = jax.random.PRNGKey(0)
        self.dims = list(dims)
        n_layers = len(self.dims) - 1
        # per-layer activation schedule from FineTuneModel.forward
        self.acts = tuple(
            "tanh" if (e <= 2 or e >= n_layers - 3) else activation
            for e in range(n_layers)
        )
        self.in_dim = self.dims[0]
        self.out_dim = self.dims[-1]
        self.mxu_dtype = mxu_dtype
        self.approximate_gelu = approximate_gelu
        self.max_batch_tile = max_batch_tile
        # single 128-lane-aligned padded width for all layers
        self.d_pad = max(128, _round_up(max(self.dims), 128))

        # parameters kept in f32 (reference); W stored as (din, dout) == W_pt.T
        self.params = []
        for l in range(n_layers):
            din, dout = self.dims[l], self.dims[l + 1]
            key, kw, kb = jax.random.split(key, 3)
            bound = 1.0 / math.sqrt(din)          # torch.nn.Linear default scale
            w = jax.random.uniform(kw, (din, dout), jnp.float32, -bound, bound)
            b = jax.random.uniform(kb, (dout,), jnp.float32, -bound, bound)
            self.params.append((w, b))

        # stacked, zero-padded weights/biases.  Padding is exactly zero and
        # act(0)=0 for tanh/gelu/relu, so padded lanes stay zero.
        w_all = jnp.zeros((n_layers, self.d_pad, self.d_pad), jnp.float32)
        b_all = jnp.zeros((n_layers, 1, self.d_pad), jnp.float32)
        for l, (w, b) in enumerate(self.params):
            din, dout = w.shape
            w_all = w_all.at[l, :din, :dout].set(w)
            b_all = b_all.at[l, 0, :dout].set(b)
        self.w_all = w_all.astype(mxu_dtype)      # bf16 MXU operands (v6e/v7x)
        self.b_all = b_all                        # biases stay f32

    def __call__(self, x, slice_output=True):
        batch, din = x.shape
        assert din == self.in_dim
        tb, b_pad = _choose_tiling(batch, self.max_batch_tile)
        return _forward_jit(
            x, self.w_all, self.b_all,
            acts=self.acts, tb=tb, b_pad=b_pad, out_dim=self.out_dim,
            mxu_dtype=self.mxu_dtype, gelu_approx=self.approximate_gelu,
            slice_output=slice_output)

    def reference(self, x, match_mxu_dtype=True):
        """Pure-JAX reference mirroring the PyTorch forward.

        match_mxu_dtype=True uses the same bf16-operand / f32-accumulate
        matmul path as the kernel (tight comparison); False is the exact f32
        torch-equivalent math (loose comparison).
        """
        h = x.astype(jnp.float32)
        for act, (w, b) in zip(self.acts, self.params):
            if match_mxu_dtype:
                z = jnp.dot(h.astype(self.mxu_dtype), w.astype(self.mxu_dtype),
                            preferred_element_type=jnp.float32) + b
            else:
                z = h @ w + b
            h = _apply_act(z, act, self.approximate_gelu)
        return h


if __name__ == "__main__":
    key = jax.random.PRNGKey(0)
    k_in, k_params = jax.random.split(key)

    # Shapes implied by FineTuneModel built from a small cycleik core MLP:
    #   core: input_dim=8, hidden=32, output_dim=8, 8 Linear layers
    #   FineTuneModel(core, output_dimension=7) ->
    #   dims: 8 -> 32 -> 32 -> 32 -> 32 -> 32 -> 32 -> 32 -> 7   (8 layers)
    #   acts: tanh,tanh,tanh, gelu,gelu, tanh,tanh,tanh
    dims = [8, 32, 32, 32, 32, 32, 32, 32, 7]
    batch = 2

    model = FineTuneModelPallas(dims, activation="gelu", key=k_params)
    x = jax.random.normal(k_in, (batch, dims[0]), jnp.float32)

    out = model(x)
    jax.block_until_ready(out)

    # correctness checks
    assert out.shape == (batch, dims[-1])
    assert bool(jnp.all(jnp.abs(out) <= 1.0 + 1e-6))          # tanh-bounded

    # tight: same bf16-operand / f32-accumulate math as the kernel
    ref_same = model.reference(x, match_mxu_dtype=True)
    assert bool(jnp.allclose(out, ref_same, rtol=1e-4, atol=1e-4))

    # loose: exact f32 / erf-GELU (torch-equivalent) reference; deviation is
    # only from bf16 MXU operands
    ref_f32 = model.reference(x, match_mxu_dtype=False)
    assert bool(jnp.allclose(out, ref_f32, rtol=5e-2, atol=5e-2))

    print("KERNEL_OK")
</pallas_src>

<mosaic_0001>
module attributes {stable_mosaic.version = 11 : i64} {
  func.func @_fused_mlp_kernel(%arg0: i32, %arg1: memref<8x8xf32, #tpu.memory_space<vmem>>, %arg2: memref<8x128x128xbf16, #tpu.memory_space<vmem>>, %arg3: memref<8x1x128xf32, #tpu.memory_space<vmem>>, %arg4: memref<8x128xf32, #tpu.memory_space<vmem>>) attributes {dimension_semantics = [#tpu.dimension_semantics<parallel>], iteration_bounds = array<i64: 1>, scalar_prefetch = 0 : i64, scratch_operands = 0 : i64, tpu.core_type = #tpu.core_type<tc>, window_params = [{transform_indices = @transform_0, window_bounds = array<i64: 8, 8>}, {pipeline_mode = #tpu.pipeline_mode<synchronous>, transform_indices = @transform_1, window_bounds = array<i64: 8, 128, 128>}, {pipeline_mode = #tpu.pipeline_mode<synchronous>, transform_indices = @transform_2, window_bounds = array<i64: 8, 1, 128>}, {transform_indices = @transform_3, window_bounds = array<i64: 8, 128>}]} {
    %c0 = arith.constant 0 : index
    %c0_0 = arith.constant 0 : index
    %0 = vector.load %arg1[%c0, %c0_0] : memref<8x8xf32, #tpu.memory_space<vmem>>, vector<8x8xf32>
    %c0_1 = arith.constant 0 : index
    %c0_2 = arith.constant 0 : index
    %c0_3 = arith.constant 0 : index
    %1 = vector.load %arg2[%c0_1, %c0_2, %c0_3] : memref<8x128x128xbf16, #tpu.memory_space<vmem>>, vector<1x8x128xbf16>
    %2 = vector.shape_cast %1 : vector<1x8x128xbf16> to vector<8x128xbf16>
    %3 = arith.truncf %0 : vector<8x8xf32> to vector<8x8xbf16>
    %cst = arith.constant dense<0.000000e+00> : vector<8x128xf32>
    %4 = tpu.matmul %3, %2, %cst {dimension_numbers = #tpu.dot_dimension_numbers<[1], [0], [0], [1], [0, 0, 1, 1], [], []>} : vector<8x8xbf16>, vector<8x128xbf16>, vector<8x128xf32> -> vector<8x128xf32>
    %c0_4 = arith.constant 0 : index
    %c0_5 = arith.constant 0 : index
    %c0_6 = arith.constant 0 : index
    %5 = vector.load %arg3[%c0_4, %c0_5, %c0_6] : memref<8x1x128xf32, #tpu.memory_space<vmem>>, vector<1x1x128xf32>
    %6 = vector.shape_cast %5 : vector<1x1x128xf32> to vector<1x128xf32>
    %7 = vector.broadcast %6 : vector<1x128xf32> to vector<8x128xf32>
    %8 = arith.addf %4, %7 : vector<8x128xf32>
    %9 = math.tanh %8 : vector<8x128xf32>
    %c1 = arith.constant 1 : index
    %c0_7 = arith.constant 0 : index
    %c0_8 = arith.constant 0 : index
    %10 = vector.load %arg2[%c1, %c0_7, %c0_8] : memref<8x128x128xbf16, #tpu.memory_space<vmem>>, vector<1x128x128xbf16>
    %11 = vector.shape_cast %10 : vector<1x128x128xbf16> to vector<128x128xbf16>
    %12 = arith.truncf %9 : vector<8x128xf32> to vector<8x128xbf16>
    %cst_9 = arith.constant dense<0.000000e+00> : vector<8x128xf32>
    %13 = tpu.matmul %12, %11, %cst_9 {dimension_numbers = #tpu.dot_dimension_numbers<[1], [0], [0], [1], [0, 0, 1, 1], [], []>} : vector<8x128xbf16>, vector<128x128xbf16>, vector<8x128xf32> -> vector<8x128xf32>
    %c1_10 = arith.constant 1 : index
    %c0_11 = arith.constant 0 : index
    %c0_12 = arith.constant 0 : index
    %14 = vector.load %arg3[%c1_10, %c0_11, %c0_12] : memref<8x1x128xf32, #tpu.memory_space<vmem>>, vector<1x1x128xf32>
    %15 = vector.shape_cast %14 : vector<1x1x128xf32> to vector<1x128xf32>
    %16 = vector.broadcast %15 : vector<1x128xf32> to vector<8x128xf32>
    %17 = arith.addf %13, %16 : vector<8x128xf32>
    %18 = math.tanh %17 : vector<8x128xf32>
    %c2 = arith.constant 2 : index
    %c0_13 = arith.constant 0 : index
    %c0_14 = arith.constant 0 : index
    %19 = vector.load %arg2[%c2, %c0_13, %c0_14] : memref<8x128x128xbf16, #tpu.memory_space<vmem>>, vector<1x128x128xbf16>
    %20 = vector.shape_cast %19 : vector<1x128x128xbf16> to vector<128x128xbf16>
    %21 = arith.truncf %18 : vector<8x128xf32> to vector<8x128xbf16>
    %cst_15 = arith.constant dense<0.000000e+00> : vector<8x128xf32>
    %22 = tpu.matmul %21, %20, %cst_15 {dimension_numbers = #tpu.dot_dimension_numbers<[1], [0], [0], [1], [0, 0, 1, 1], [], []>} : vector<8x128xbf16>, vector<128x128xbf16>, vector<8x128xf32> -> vector<8x128xf32>
    %c2_16 = arith.constant 2 : index
    %c0_17 = arith.constant 0 : index
    %c0_18 = arith.constant 0 : index
    %23 = vector.load %arg3[%c2_16, %c0_17, %c0_18] : memref<8x1x128xf32, #tpu.memory_space<vmem>>, vector<1x1x128xf32>
    %24 = vector.shape_cast %23 : vector<1x1x128xf32> to vector<1x128xf32>
    %25 = vector.broadcast %24 : vector<1x128xf32> to vector<8x128xf32>
    %26 = arith.addf %22, %25 : vector<8x128xf32>
    %27 = math.tanh %26 : vector<8x128xf32>
    %c3 = arith.constant 3 : index
    %c0_19 = arith.constant 0 : index
    %c0_20 = arith.constant 0 : index
    %28 = vector.load %arg2[%c3, %c0_19, %c0_20] : memref<8x128x128xbf16, #tpu.memory_space<vmem>>, vector<1x128x128xbf16>
    %29 = vector.shape_cast %28 : vector<1x128x128xbf16> to vector<128x128xbf16>
    %30 = arith.truncf %27 : vector<8x128xf32> to vector<8x128xbf16>
    %cst_21 = arith.constant dense<0.000000e+00> : vector<8x128xf32>
    %31 = tpu.matmul %30, %29, %cst_21 {dimension_numbers = #tpu.dot_dimension_numbers<[1], [0], [0], [1], [0, 0, 1, 1], [], []>} : vector<8x128xbf16>, vector<128x128xbf16>, vector<8x128xf32> -> vector<8x128xf32>
    %c3_22 = arith.constant 3 : index
    %c0_23 = arith.constant 0 : index
    %c0_24 = arith.constant 0 : index
    %32 = vector.load %arg3[%c3_22, %c0_23, %c0_24] : memref<8x1x128xf32, #tpu.memory_space<vmem>>, vector<1x1x128xf32>
    %33 = vector.shape_cast %32 : vector<1x1x128xf32> to vector<1x128xf32>
    %34 = vector.broadcast %33 : vector<1x128xf32> to vector<8x128xf32>
    %35 = arith.addf %31, %34 : vector<8x128xf32>
    %cst_25 = arith.constant 5.000000e-01 : f32
    %36 = vector.broadcast %cst_25 : f32 to vector<8x128xf32>
    %37 = arith.mulf %36, %35 : vector<8x128xf32>
    %cst_26 = arith.constant 0.707106769 : f32
    %38 = vector.broadcast %cst_26 : f32 to vector<8x128xf32>
    %39 = arith.mulf %35, %38 : vector<8x128xf32>
    %40 = math.erf %39 : vector<8x128xf32>
    %cst_27 = arith.constant 1.000000e+00 : f32
    %41 = vector.broadcast %cst_27 : f32 to vector<8x128xf32>
    %42 = arith.addf %41, %40 : vector<8x128xf32>
    %43 = arith.mulf %37, %42 : vector<8x128xf32>
    %c4 = arith.constant 4 : index
    %c0_28 = arith.constant 0 : index
    %c0_29 = arith.constant 0 : index
    %44 = vector.load %arg2[%c4, %c0_28, %c0_29] : memref<8x128x128xbf16, #tpu.memory_space<vmem>>, vector<1x128x128xbf16>
    %45 = vector.shape_cast %44 : vector<1x128x128xbf16> to vector<128x128xbf16>
    %46 = arith.truncf %43 : vector<8x128xf32> to vector<8x128xbf16>
    %cst_30 = arith.constant dense<0.000000e+00> : vector<8x128xf32>
    %47 = tpu.matmul %46, %45, %cst_30 {dimension_numbers = #tpu.dot_dimension_numbers<[1], [0], [0], [1], [0, 0, 1, 1], [], []>} : vector<8x128xbf16>, vector<128x128xbf16>, vector<8x128xf32> -> vector<8x128xf32>
    %c4_31 = arith.constant 4 : index
    %c0_32 = arith.constant 0 : index
    %c0_33 = arith.constant 0 : index
    %48 = vector.load %arg3[%c4_31, %c0_32, %c0_33] : memref<8x1x128xf32, #tpu.memory_space<vmem>>, vector<1x1x128xf32>
    %49 = vector.shape_cast %48 : vector<1x1x128xf32> to vector<1x128xf32>
    %50 = vector.broadcast %49 : vector<1x128xf32> to vector<8x128xf32>
    %51 = arith.addf %47, %50 : vector<8x128xf32>
    %cst_34 = arith.constant 5.000000e-01 : f32
    %52 = vector.broadcast %cst_34 : f32 to vector<8x128xf32>
    %53 = arith.mulf %52, %51 : vector<8x128xf32>
    %cst_35 = arith.constant 0.707106769 : f32
    %54 = vector.broadcast %cst_35 : f32 to vector<8x128xf32>
    %55 = arith.mulf %51, %54 : vector<8x128xf32>
    %56 = math.erf %55 : vector<8x128xf32>
    %cst_36 = arith.constant 1.000000e+00 : f32
    %57 = vector.broadcast %cst_36 : f32 to vector<8x128xf32>
    %58 = arith.addf %57, %56 : vector<8x128xf32>
    %59 = arith.mulf %53, %58 : vector<8x128xf32>
    %c5 = arith.constant 5 : index
    %c0_37 = arith.constant 0 : index
    %c0_38 = arith.constant 0 : index
    %60 = vector.load %arg2[%c5, %c0_37, %c0_38] : memref<8x128x128xbf16, #tpu.memory_space<vmem>>, vector<1x128x128xbf16>
    %61 = vector.shape_cast %60 : vector<1x128x128xbf16> to vector<128x128xbf16>
    %62 = arith.truncf %59 : vector<8x128xf32> to vector<8x128xbf16>
    %cst_39 = arith.constant dense<0.000000e+00> : vector<8x128xf32>
    %63 = tpu.matmul %62, %61, %cst_39 {dimension_numbers = #tpu.dot_dimension_numbers<[1], [0], [0], [1], [0, 0, 1, 1], [], []>} : vector<8x128xbf16>, vector<128x128xbf16>, vector<8x128xf32> -> vector<8x128xf32>
    %c5_40 = arith.constant 5 : index
    %c0_41 = arith.constant 0 : index
    %c0_42 = arith.constant 0 : index
    %64 = vector.load %arg3[%c5_40, %c0_41, %c0_42] : memref<8x1x128xf32, #tpu.memory_space<vmem>>, vector<1x1x128xf32>
    %65 = vector.shape_cast %64 : vector<1x1x128xf32> to vector<1x128xf32>
    %66 = vector.broadcast %65 : vector<1x128xf32> to vector<8x128xf32>
    %67 = arith.addf %63, %66 : vector<8x128xf32>
    %68 = math.tanh %67 : vector<8x128xf32>
    %c6 = arith.constant 6 : index
    %c0_43 = arith.constant 0 : index
    %c0_44 = arith.constant 0 : index
    %69 = vector.load %arg2[%c6, %c0_43, %c0_44] : memref<8x128x128xbf16, #tpu.memory_space<vmem>>, vector<1x128x128xbf16>
    %70 = vector.shape_cast %69 : vector<1x128x128xbf16> to vector<128x128xbf16>
    %71 = arith.truncf %68 : vector<8x128xf32> to vector<8x128xbf16>
    %cst_45 = arith.constant dense<0.000000e+00> : vector<8x128xf32>
    %72 = tpu.matmul %71, %70, %cst_45 {dimension_numbers = #tpu.dot_dimension_numbers<[1], [0], [0], [1], [0, 0, 1, 1], [], []>} : vector<8x128xbf16>, vector<128x128xbf16>, vector<8x128xf32> -> vector<8x128xf32>
    %c6_46 = arith.constant 6 : index
    %c0_47 = arith.constant 0 : index
    %c0_48 = arith.constant 0 : index
    %73 = vector.load %arg3[%c6_46, %c0_47, %c0_48] : memref<8x1x128xf32, #tpu.memory_space<vmem>>, vector<1x1x128xf32>
    %74 = vector.shape_cast %73 : vector<1x1x128xf32> to vector<1x128xf32>
    %75 = vector.broadcast %74 : vector<1x128xf32> to vector<8x128xf32>
    %76 = arith.addf %72, %75 : vector<8x128xf32>
    %77 = math.tanh %76 : vector<8x128xf32>
    %c7 = arith.constant 7 : index
    %c0_49 = arith.constant 0 : index
    %c0_50 = arith.constant 0 : index
    %78 = vector.load %arg2[%c7, %c0_49, %c0_50] : memref<8x128x128xbf16, #tpu.memory_space<vmem>>, vector<1x128x128xbf16>
    %79 = vector.shape_cast %78 : vector<1x128x128xbf16> to vector<128x128xbf16>
    %80 = arith.truncf %77 : vector<8x128xf32> to vector<8x128xbf16>
    %cst_51 = arith.constant dense<0.000000e+00> : vector<8x128xf32>
    %81 = tpu.matmul %80, %79, %cst_51 {dimension_numbers = #tpu.dot_dimension_numbers<[1], [0], [0], [1], [0, 0, 1, 1], [], []>} : vector<8x128xbf16>, vector<128x128xbf16>, vector<8x128xf32> -> vector<8x128xf32>
    %c7_52 = arith.constant 7 : index
    %c0_53 = arith.constant 0 : index
    %c0_54 = arith.constant 0 : index
    %82 = vector.load %arg3[%c7_52, %c0_53, %c0_54] : memref<8x1x128xf32, #tpu.memory_space<vmem>>, vector<1x1x128xf32>
    %83 = vector.shape_cast %82 : vector<1x1x128xf32> to vector<1x128xf32>
    %84 = vector.broadcast %83 : vector<1x128xf32> to vector<8x128xf32>
    %85 = arith.addf %81, %84 : vector<8x128xf32>
    %86 = math.tanh %85 : vector<8x128xf32>
    %c0_55 = arith.constant 0 : index
    %c0_56 = arith.constant 0 : index
    %87 = vector.load %arg4[%c0_55, %c0_56] : memref<8x128xf32, #tpu.memory_space<vmem>>, vector<8x128xf32>
    tpu.vector_store %arg4[%c0_55, %c0_56], %86 {strides = array<i32>} : memref<8x128xf32, #tpu.memory_space<vmem>>, vector<8x128xf32>,
    return
  }
  func.func @transform_0(%arg0: i32) -> (i32, i32) {
    %c0_i32 = arith.constant 0 : i32
    %c0_i32_0 = arith.constant 0 : i32
    return %arg0, %c0_i32 : i32, i32
  }
  func.func @transform_1(%arg0: i32) -> (i32, i32, i32) {
    %c0_i32 = arith.constant 0 : i32
    %c0_i32_0 = arith.constant 0 : i32
    %c0_i32_1 = arith.constant 0 : i32
    %c0_i32_2 = arith.constant 0 : i32
    return %c0_i32, %c0_i32_0, %c0_i32_1 : i32, i32, i32
  }
  func.func @transform_2(%arg0: i32) -> (i32, i32, i32) {
    %c0_i32 = arith.constant 0 : i32
    %c0_i32_0 = arith.constant 0 : i32
    %c0_i32_1 = arith.constant 0 : i32
    %c0_i32_2 = arith.constant 0 : i32
    return %c0_i32, %c0_i32_0, %c0_i32_1 : i32, i32, i32
  }
  func.func @transform_3(%arg0: i32) -> (i32, i32) {
    %c0_i32 = arith.constant 0 : i32
    %c0_i32_0 = arith.constant 0 : i32
    return %arg0, %c0_i32 : i32, i32
  }
}

</mosaic_0001>

<llo_original>
// kernel: _forward_jit.1
$region0: #{_forward_jit.1}
  #allocation0 [shape = 'u32[]', space=smem, size = 0x4, offset = 0x4, fixed_abs, tag = 'smem constant byte address 0x4 - core index']
  #allocation1 [shape = 'u32[72,128]{1,0:T(1,128)}', space=vmem, size = 0x9000, scoped, tag = 'internal scratch']
  %s0 = inlined_call_operand.vmem [shape: f32[8,8], index: 0, kind: input, shape index: {}]
  %s1 = inlined_call_operand.hbm [shape: bf16[8,128,128], index: 1, kind: input, shape index: {}]
  %s2 = inlined_call_operand.vmem [shape: f32[8,1,128], index: 2, kind: input, shape index: {}]
  %s3 = inlined_call_operand.vmem [shape: f32[8,128], index: 3, kind: output, shape index: {}]
  %s4 = sld [smem:[#allocation0]]
  $region26: #{_forward_jit.1} parent=0
    _
  %s6 = ssub.s32 1, %s4
  %s7 = scalar_select 0, %s6, %s4
  $region1: #{_forward_jit.1} parent=0
    #allocation2 [shape = 'u8[262144]{0}', space=vmem, size = 0x40000, scoped, tag = 'input window, operand 1, single buffered']
    #allocation3 [shape = 's32[1]{0}', space=sflag, size = 0x4, scoped, tag = 'scoped memory for _forward_jit.1']
    %8 = vsyncpa [#allocation3], 0
    // Predicated region
    $region2: #{_forward_jit.1} parent=1 // pred_check
      _
    $region3: #{_forward_jit.1} parent=1 // pred_check_branch
      %10 = sbr.rel (0) target = $region5
    $region4: #{_forward_jit.1} parent=1 // pred_region
      _
    $region5: #{_forward_jit.1} parent=1 // pred_fallthru
      _
    // Predicated region
    $region6: #{_forward_jit.1} parent=1 // pred_check
      _
    $region7: #{_forward_jit.1} parent=1 // pred_check_branch
      %12 = sbr.rel (0) target = $region9
    $region8: #{_forward_jit.1} parent=1 // pred_region
      %14 = vsyncadd [#allocation3], 0
      %s15 = sshll.u32 %s1, 4
      %s16 = int_to_ptr.hbm [resolvable:$true] %s15
      %s17 = sshll.u32 [#allocation2], 4
      %s18 = int_to_ptr.vmem [resolvable:$true] %s17
      %23 = dma.hbm_to_vmem [thread:$0]  %s16, 8192, %s18, [#allocation3], 64, 64, 4
    $region9: #{_forward_jit.1} parent=1 // pred_fallthru
      _
    // Predicated region
    $region10: #{_forward_jit.1} parent=1 // pred_check
      _
    $region11: #{_forward_jit.1} parent=1 // pred_check_branch
      %25 = sbr.rel (0) target = $region13
    $region12: #{_forward_jit.1} parent=1 // pred_region
      _
    $region13: #{_forward_jit.1} parent=1 // pred_fallthru
      _
    // Predicated region
    $region14: #{_forward_jit.1} parent=1 // pred_check
      _
    $region15: #{_forward_jit.1} parent=1 // pred_check_branch
      %27 = sbr.rel (0) target = $region17
    $region16: #{_forward_jit.1} parent=1 // pred_region
      %29 = dma.done [#allocation3], 8192
    $region17: #{_forward_jit.1} parent=1 // pred_fallthru
      _
    %v31 = vld [vmem:[%s0] sm:$0xff]
    %v32 = vld [vmem:[#allocation2] sm:$0xf]
    %v33 = vpack.c.bf16 %v31, %v31
    %v34 = vld [vmem:[%s2] sm:$0x1]
    %v36 = vperm.slane %v34, 0
    %vm38 = vcmask 64512
    %v40 = vsel %vm38, %v33, 0
    %vm42 = vcmask 1043456
    %v44 = vsel %vm42, %v32, 0
    %46 = vmatpush.bf16.msra.mxu0 0
    %47 = vmatpush.bf16.msra.mxu0 0
    %48 = vmatpush.bf16.msra.mxu0 0
    %49 = vmatpush.bf16.msra.mxu0 0
    %50 = vmatpush.bf16.msra.mxu0 0
    %51 = vmatpush.bf16.msra.mxu0 0
    %52 = vmatpush.bf16.msra.mxu0 0
    %53 = vmatpush.bf16.msra.mxu0 %v44
    %54 = vmatmul.bf16.gmra.mxu0 %v40
    %v55 = vpop.f32.mrf.mxu0
    %v56 = vadd.f32 %v36, %v55
    %v57 = vpop.f32.mrf.mxu0
    %58 = vdwg.mxu0
    %v59 = vtanh.pop %v56
    %s60 = scalar_lea.vmem [#allocation2], 64
    %v61 = vld [vmem:[%s60] sm:$0xf]
    %v62 = vld [vmem:[%s60 + $0x4] sm:$0xf]
    %v63 = vld [vmem:[%s60 + $0x8] sm:$0xf]
    %v64 = vld [vmem:[%s60 + $0xc] sm:$0xf]
    %v65 = vld [vmem:[%s60 + $0x10] sm:$0xf]
    %v66 = vld [vmem:[%s60 + $0x14] sm:$0xf]
    %v67 = vld [vmem:[%s60 + $0x18] sm:$0xf]
    %v68 = vld [vmem:[%s60 + $0x1c] sm:$0xf]
    %v69 = vld [vmem:[%s60 + $0x20] sm:$0xf]
    %v70 = vld [vmem:[%s60 + $0x24] sm:$0xf]
    %v71 = vld [vmem:[%s60 + $0x28] sm:$0xf]
    %v72 = vld [vmem:[%s60 + $0x2c] sm:$0xf]
    %v73 = vld [vmem:[%s60 + $0x30] sm:$0xf]
    %v74 = vld [vmem:[%s60 + $0x34] sm:$0xf]
    %v75 = vld [vmem:[%s60 + $0x38] sm:$0xf]
    %v76 = vld [vmem:[%s60 + $0x3c] sm:$0xf]
    %v77 = vpack.c.bf16 %v59, %v59
    %s78 = scalar_lea.vmem %s2, 1
    %v79 = vld [vmem:[%s78] sm:$0x1]
    %v81 = vperm.slane %v79, 0
    %v99 = vunpack.c.l.b16 %v61
    %v100 = vunpack.c.l.b16 %v62
    %v101 = vunpack.c.l.b16 %v63
    %v102 = vunpack.c.l.b16 %v64
    %v103 = vunpack.c.l.b16 %v65
    %v104 = vunpack.c.l.b16 %v66
    %v105 = vunpack.c.l.b16 %v67
    %v106 = vunpack.c.l.b16 %v68
    %v107 = vunpack.c.l.b16 %v69
    %v108 = vunpack.c.l.b16 %v70
    %v109 = vunpack.c.l.b16 %v71
    %v110 = vunpack.c.l.b16 %v72
    %v111 = vunpack.c.l.b16 %v73
    %v112 = vunpack.c.l.b16 %v74
    %v113 = vunpack.c.l.b16 %v75
    %v114 = vunpack.c.l.b16 %v76
    %v115 = vpack.c.b16 %v100, %v99
    %v116 = vpack.c.b16 %v102, %v101
    %v117 = vpack.c.b16 %v104, %v103
    %v118 = vpack.c.b16 %v106, %v105
    %v119 = vpack.c.b16 %v108, %v107
    %v120 = vpack.c.b16 %v110, %v109
    %v121 = vpack.c.b16 %v112, %v111
    %v122 = vpack.c.b16 %v114, %v113
    %131 = vmatpush.bf16.msra.mxu0 %v122
    %132 = vmatpush.bf16.msra.mxu0 %v121
    %133 = vmatpush.bf16.msra.mxu0 %v120
    %134 = vmatpush.bf16.msra.mxu0 %v119
    %135 = vmatpush.bf16.msra.mxu0 %v118
    %136 = vmatpush.bf16.msra.mxu0 %v117
    %137 = vmatpush.bf16.msra.mxu0 %v116
    %138 = vmatpush.bf16.msra.mxu0 %v115
    %139 = vmatmul.bf16.gmra.mxu0 %v77
    %v140 = vpop.f32.mrf.mxu0
    %v141 = vadd.f32 %v81, %v140
    %v142 = vpop.f32.mrf.mxu0
    %143 = vdwg.mxu0
    %v144 = vtanh.pop %v141
    %s145 = scalar_lea.vmem [#allocation2], 128
    %v146 = vld [vmem:[%s145] sm:$0xf]
    %v147 = vld [vmem:[%s145 + $0x4] sm:$0xf]
    %v148 = vld [vmem:[%s145 + $0x8] sm:$0xf]
    %v149 = vld [vmem:[%s145 + $0xc] sm:$0xf]
    %v150 = vld [vmem:[%s145 + $0x10] sm:$0xf]
    %v151 = vld [vmem:[%s145 + $0x14] sm:$0xf]
    %v152 = vld [vmem:[%s145 + $0x18] sm:$0xf]
    %v153 = vld [vmem:[%s145 + $0x1c] sm:$0xf]
    %v154 = vld [vmem:[%s145 + $0x20] sm:$0xf]
    %v155 = vld [vmem:[%s145 + $0x24] sm:$0xf]
    %v156 = vld [vmem:[%s145 + $0x28] sm:$0xf]
    %v157 = vld [vmem:[%s145 + $0x2c] sm:$0xf]
    %v158 = vld [vmem:[%s145 + $0x30] sm:$0xf]
    %v159 = vld [vmem:[%s145 + $0x34] sm:$0xf]
    %v160 = vld [vmem:[%s145 + $0x38] sm:$0xf]
    %v161 = vld [vmem:[%s145 + $0x3c] sm:$0xf]
    %v162 = vpack.c.bf16 %v144, %v144
    %s163 = scalar_lea.vmem %s2, 2
    %v164 = vld [vmem:[%s163] sm:$0x1]
    %v166 = vperm.slane %v164, 0
    %v184 = vunpack.c.l.b16 %v146
    %v185 = vunpack.c.l.b16 %v147
    %v186 = vunpack.c.l.b16 %v148
    %v187 = vunpack.c.l.b16 %v149
    %v188 = vunpack.c.l.b16 %v150
    %v189 = vunpack.c.l.b16 %v151
    %v190 = vunpack.c.l.b16 %v152
    %v191 = vunpack.c.l.b16 %v153
    %v192 = vunpack.c.l.b16 %v154
    %v193 = vunpack.c.l.b16 %v155
    %v194 = vunpack.c.l.b16 %v156
    %v195 = vunpack.c.l.b16 %v157
    %v196 = vunpack.c.l.b16 %v158
    %v197 = vunpack.c.l.b16 %v159
    %v198 = vunpack.c.l.b16 %v160
    %v199 = vunpack.c.l.b16 %v161
    %v200 = vpack.c.b16 %v185, %v184
    %v201 = vpack.c.b16 %v187, %v186
    %v202 = vpack.c.b16 %v189, %v188
    %v203 = vpack.c.b16 %v191, %v190
    %v204 = vpack.c.b16 %v193, %v192
    %v205 = vpack.c.b16 %v195, %v194
    %v206 = vpack.c.b16 %v197, %v196
    %v207 = vpack.c.b16 %v199, %v198
    %216 = vmatpush.bf16.msra.mxu0 %v207
    %217 = vmatpush.bf16.msra.mxu0 %v206
    %218 = vmatpush.bf16.msra.mxu0 %v205
    %219 = vmatpush.bf16.msra.mxu0 %v204
    %220 = vmatpush.bf16.msra.mxu0 %v203
    %221 = vmatpush.bf16.msra.mxu0 %v202
    %222 = vmatpush.bf16.msra.mxu0 %v201
    %223 = vmatpush.bf16.msra.mxu0 %v200
    %224 = vmatmul.bf16.gmra.mxu0 %v162
    %v225 = vpop.f32.mrf.mxu0
    %v226 = vadd.f32 %v166, %v225
    %v227 = vpop.f32.mrf.mxu0
    %228 = vdwg.mxu0
    %v229 = vtanh.pop %v226
    %s230 = scalar_lea.vmem [#allocation2], 192
    %v231 = vld [vmem:[%s230] sm:$0xf]
    %v232 = vld [vmem:[%s230 + $0x4] sm:$0xf]
    %v233 = vld [vmem:[%s230 + $0x8] sm:$0xf]
    %v234 = vld [vmem:[%s230 + $0xc] sm:$0xf]
    %v235 = vld [vmem:[%s230 + $0x10] sm:$0xf]
    %v236 = vld [vmem:[%s230 + $0x14] sm:$0xf]
    %v237 = vld [vmem:[%s230 + $0x18] sm:$0xf]
    %v238 = vld [vmem:[%s230 + $0x1c] sm:$0xf]
    %v239 = vld [vmem:[%s230 + $0x20] sm:$0xf]
    %v240 = vld [vmem:[%s230 + $0x24] sm:$0xf]
    %v241 = vld [vmem:[%s230 + $0x28] sm:$0xf]
    %v242 = vld [vmem:[%s230 + $0x2c] sm:$0xf]
    %v243 = vld [vmem:[%s230 + $0x30] sm:$0xf]
    %v244 = vld [vmem:[%s230 + $0x34] sm:$0xf]
    %v245 = vld [vmem:[%s230 + $0x38] sm:$0xf]
    %v246 = vld [vmem:[%s230 + $0x3c] sm:$0xf]
    %v247 = vpack.c.bf16 %v229, %v229
    %s248 = scalar_lea.vmem %s2, 3
    %v249 = vld [vmem:[%s248] sm:$0x1]
    %v251 = vperm.slane %v249, 0
    %v269 = vunpack.c.l.b16 %v231
    %v270 = vunpack.c.l.b16 %v232
    %v271 = vunpack.c.l.b16 %v233
    %v272 = vunpack.c.l.b16 %v234
    %v273 = vunpack.c.l.b16 %v235
    %v274 = vunpack.c.l.b16 %v236
    %v275 = vunpack.c.l.b16 %v237
    %v276 = vunpack.c.l.b16 %v238
    %v277 = vunpack.c.l.b16 %v239
    %v278 = vunpack.c.l.b16 %v240
    %v279 = vunpack.c.l.b16 %v241
    %v280 = vunpack.c.l.b16 %v242
    %v281 = vunpack.c.l.b16 %v243
    %v282 = vunpack.c.l.b16 %v244
    %v283 = vunpack.c.l.b16 %v245
    %v284 = vunpack.c.l.b16 %v246
    %v285 = vpack.c.b16 %v270, %v269
    %v286 = vpack.c.b16 %v272, %v271
    %v287 = vpack.c.b16 %v274, %v273
    %v288 = vpack.c.b16 %v276, %v275
    %v289 = vpack.c.b16 %v278, %v277
    %v290 = vpack.c.b16 %v280, %v279
    %v291 = vpack.c.b16 %v282, %v281
    %v292 = vpack.c.b16 %v284, %v283
    %301 = vmatpush.bf16.msra.mxu0 %v292
    %302 = vmatpush.bf16.msra.mxu0 %v291
    %303 = vmatpush.bf16.msra.mxu0 %v290
    %304 = vmatpush.bf16.msra.mxu0 %v289
    %305 = vmatpush.bf16.msra.mxu0 %v288
    %306 = vmatpush.bf16.msra.mxu0 %v287
    %307 = vmatpush.bf16.msra.mxu0 %v286
    %308 = vmatpush.bf16.msra.mxu0 %v285
    %309 = vmatmul.bf16.gmra.mxu0 %v247
    %v310 = vpop.f32.mrf.mxu0
    %v311 = vadd.f32 %v251, %v310
    %v312 = vpop.f32.mrf.mxu0
    %313 = vdwg.mxu0
    %v314 = vmul.f32 %v311, 0.5
    %v315 = vmul.f32 %v311, 0.70710677
    %v316 = vmul.f32 %v315, %v315
    %v317 = vmin.f32 16.0, %v316
    %v318 = vmul.f32 %v317, 2.1237322e-06
    %v319 = vadd.f32 %v318, 0.00028619796
    %v320 = vmul.f32 %v317, %v319
    %v321 = vadd.f32 %v320, 0.0036580483
    %v322 = vmul.f32 %v317, %v321
    %v323 = vadd.f32 %v322, 0.05243302
    %v324 = vmul.f32 %v317, %v323
    %v325 = vadd.f32 %v324, 0.18741608
    %v326 = vmul.f32 %v317, %v325
    %v327 = vadd.f32 %v326, 1.1283791
    %v328 = vmul.f32 %v315, %v327
    %v329 = vmul.f32 %v317, 3.8918573e-05
    %v330 = vadd.f32 %v329, 0.001143296
    %v331 = vmul.f32 %v317, %v330
    %v332 = vadd.f32 %v331, 0.014752088
    %v333 = vmul.f32 %v317, %v332
    %v334 = vadd.f32 %v333, 0.112945676
    %v335 = vmul.f32 %v317, %v334
    %v336 = vadd.f32 %v335, 0.4994258
    %v337 = vmul.f32 %v317, %v336
    %v338 = vadd.f32 %v337, 1.0
    %v339 = vrcp.pop %v338
    %v340 = vmul.f32 %v338, %v339
    %v341 = vsub.f32 1.0, %v340
    %v342 = vmul.f32 %v339, %v341
    %v343 = vadd.f32 %v339, %v342
    %vm344 = vweird.f32 %v338
    %vm345 = vweird.f32 %v339
    %vm346 = vmor %vm344, %vm345
    %v347 = vsel %vm346, %v339, %v343
    %v348 = vand.u32 2147483647, %v338
    %vm349 = vcmp.eq.f32.partialorder %v348, 8.507059e+37
    %v350 = vand.u32 %v338, 2147483648
    %v351 = vor.u32 1.1754944e-38, %v350
    %v352 = vsel %vm349, %v351, %v347
    %v353 = vmul.f32 %v328, %v352
    %v354 = vmin.f32 %v353, 1.0
    %v355 = vmax.f32 %v354, -1.0
    %v356 = vadd.f32 %v355, 1.0
    %v357 = vmul.f32 %v314, %v356
    %s358 = scalar_lea.vmem [#allocation2], 256
    %v359 = vld [vmem:[%s358] sm:$0xf]
    %v360 = vld [vmem:[%s358 + $0x4] sm:$0xf]
    %v361 = vld [vmem:[%s358 + $0x8] sm:$0xf]
    %v362 = vld [vmem:[%s358 + $0xc] sm:$0xf]
    %v363 = vld [vmem:[%s358 + $0x10] sm:$0xf]
    %v364 = vld [vmem:[%s358 + $0x14] sm:$0xf]
    %v365 = vld [vmem:[%s358 + $0x18] sm:$0xf]
    %v366 = vld [vmem:[%s358 + $0x1c] sm:$0xf]
    %v367 = vld [vmem:[%s358 + $0x20] sm:$0xf]
    %v368 = vld [vmem:[%s358 + $0x24] sm:$0xf]
    %v369 = vld [vmem:[%s358 + $0x28] sm:$0xf]
    %v370 = vld [vmem:[%s358 + $0x2c] sm:$0xf]
    %v371 = vld [vmem:[%s358 + $0x30] sm:$0xf]
    %v372 = vld [vmem:[%s358 + $0x34] sm:$0xf]
    %v373 = vld [vmem:[%s358 + $0x38] sm:$0xf]
    %v374 = vld [vmem:[%s358 + $0x3c] sm:$0xf]
    %v375 = vpack.c.bf16 %v357, %v357
    %s376 = scalar_lea.vmem %s2, 4
    %v377 = vld [vmem:[%s376] sm:$0x1]
    %v379 = vperm.slane %v377, 0
    %v397 = vunpack.c.l.b16 %v359
    %v398 = vunpack.c.l.b16 %v360
    %v399 = vunpack.c.l.b16 %v361
    %v400 = vunpack.c.l.b16 %v362
    %v401 = vunpack.c.l.b16 %v363
    %v402 = vunpack.c.l.b16 %v364
    %v403 = vunpack.c.l.b16 %v365
    %v404 = vunpack.c.l.b16 %v366
    %v405 = vunpack.c.l.b16 %v367
    %v406 = vunpack.c.l.b16 %v368
    %v407 = vunpack.c.l.b16 %v369
    %v408 = vunpack.c.l.b16 %v370
    %v409 = vunpack.c.l.b16 %v371
    %v410 = vunpack.c.l.b16 %v372
    %v411 = vunpack.c.l.b16 %v373
    %v412 = vunpack.c.l.b16 %v374
    %v413 = vpack.c.b16 %v398, %v397
    %v414 = vpack.c.b16 %v400, %v399
    %v415 = vpack.c.b16 %v402, %v401
    %v416 = vpack.c.b16 %v404, %v403
    %v417 = vpack.c.b16 %v406, %v405
    %v418 = vpack.c.b16 %v408, %v407
    %v419 = vpack.c.b16 %v410, %v409
    %v420 = vpack.c.b16 %v412, %v411
    %429 = vmatpush.bf16.msra.mxu0 %v420
    %430 = vmatpush.bf16.msra.mxu0 %v419
    %431 = vmatpush.bf16.msra.mxu0 %v418
    %432 = vmatpush.bf16.msra.mxu0 %v417
    %433 = vmatpush.bf16.msra.mxu0 %v416
    %434 = vmatpush.bf16.msra.mxu0 %v415
    %435 = vmatpush.bf16.msra.mxu0 %v414
    %436 = vmatpush.bf16.msra.mxu0 %v413
    %437 = vmatmul.bf16.gmra.mxu0 %v375
    %v438 = vpop.f32.mrf.mxu0
    %v439 = vadd.f32 %v379, %v438
    %v440 = vpop.f32.mrf.mxu0
    %441 = vdwg.mxu0
    %v442 = vmul.f32 %v439, 0.5
    %v443 = vmul.f32 %v439, 0.70710677
    %v444 = vmul.f32 %v443, %v443
    %v445 = vmin.f32 16.0, %v444
    %v446 = vmul.f32 %v445, 2.1237322e-06
    %v447 = vadd.f32 %v446, 0.00028619796
    %v448 = vmul.f32 %v445, %v447
    %v449 = vadd.f32 %v448, 0.0036580483
    %v450 = vmul.f32 %v445, %v449
    %v451 = vadd.f32 %v450, 0.05243302
    %v452 = vmul.f32 %v445, %v451
    %v453 = vadd.f32 %v452, 0.18741608
    %v454 = vmul.f32 %v445, %v453
    %v455 = vadd.f32 %v454, 1.1283791
    %v456 = vmul.f32 %v443, %v455
    %v457 = vmul.f32 %v445, 3.8918573e-05
    %v458 = vadd.f32 %v457, 0.001143296
    %v459 = vmul.f32 %v445, %v458
    %v460 = vadd.f32 %v459, 0.014752088
    %v461 = vmul.f32 %v445, %v460
    %v462 = vadd.f32 %v461, 0.112945676
    %v463 = vmul.f32 %v445, %v462
    %v464 = vadd.f32 %v463, 0.4994258
    %v465 = vmul.f32 %v445, %v464
    %v466 = vadd.f32 %v465, 1.0
    %v467 = vrcp.pop %v466
    %v468 = vmul.f32 %v466, %v467
    %v469 = vsub.f32 1.0, %v468
    %v470 = vmul.f32 %v467, %v469
    %v471 = vadd.f32 %v467, %v470
    %vm472 = vweird.f32 %v466
    %vm473 = vweird.f32 %v467
    %vm474 = vmor %vm472, %vm473
    %v475 = vsel %vm474, %v467, %v471
    %v476 = vand.u32 2147483647, %v466
    %vm477 = vcmp.eq.f32.partialorder %v476, 8.507059e+37
    %v478 = vand.u32 %v466, 2147483648
    %v479 = vor.u32 1.1754944e-38, %v478
    %v480 = vsel %vm477, %v479, %v475
    %v481 = vmul.f32 %v456, %v480
    %v482 = vmin.f32 %v481, 1.0
    %v483 = vmax.f32 %v482, -1.0
    %v484 = vadd.f32 %v483, 1.0
    %v485 = vmul.f32 %v442, %v484
    %s486 = scalar_lea.vmem [#allocation2], 320
    %v487 = vld [vmem:[%s486] sm:$0xf]
    %v488 = vld [vmem:[%s486 + $0x4] sm:$0xf]
    %v489 = vld [vmem:[%s486 + $0x8] sm:$0xf]
    %v490 = vld [vmem:[%s486 + $0xc] sm:$0xf]
    %v491 = vld [vmem:[%s486 + $0x10] sm:$0xf]
    %v492 = vld [vmem:[%s486 + $0x14] sm:$0xf]
    %v493 = vld [vmem:[%s486 + $0x18] sm:$0xf]
    %v494 = vld [vmem:[%s486 + $0x1c] sm:$0xf]
    %v495 = vld [vmem:[%s486 + $0x20] sm:$0xf]
    %v496 = vld [vmem:[%s486 + $0x24] sm:$0xf]
    %v497 = vld [vmem:[%s486 + $0x28] sm:$0xf]
    %v498 = vld [vmem:[%s486 + $0x2c] sm:$0xf]
    %v499 = vld [vmem:[%s486 + $0x30] sm:$0xf]
    %v500 = vld [vmem:[%s486 + $0x34] sm:$0xf]
    %v501 = vld [vmem:[%s486 + $0x38] sm:$0xf]
    %v502 = vld [vmem:[%s486 + $0x3c] sm:$0xf]
    %v503 = vpack.c.bf16 %v485, %v485
    %s504 = scalar_lea.vmem %s2, 5
    %v505 = vld [vmem:[%s504] sm:$0x1]
    %v507 = vperm.slane %v505, 0
    %v525 = vunpack.c.l.b16 %v487
    %v526 = vunpack.c.l.b16 %v488
    %v527 = vunpack.c.l.b16 %v489
    %v528 = vunpack.c.l.b16 %v490
    %v529 = vunpack.c.l.b16 %v491
    %v530 = vunpack.c.l.b16 %v492
    %v531 = vunpack.c.l.b16 %v493
    %v532 = vunpack.c.l.b16 %v494
    %v533 = vunpack.c.l.b16 %v495
    %v534 = vunpack.c.l.b16 %v496
    %v535 = vunpack.c.l.b16 %v497
    %v536 = vunpack.c.l.b16 %v498
    %v537 = vunpack.c.l.b16 %v499
    %v538 = vunpack.c.l.b16 %v500
    %v539 = vunpack.c.l.b16 %v501
    %v540 = vunpack.c.l.b16 %v502
    %v541 = vpack.c.b16 %v526, %v525
    %v542 = vpack.c.b16 %v528, %v527
    %v543 = vpack.c.b16 %v530, %v529
    %v544 = vpack.c.b16 %v532, %v531
    %v545 = vpack.c.b16 %v534, %v533
    %v546 = vpack.c.b16 %v536, %v535
    %v547 = vpack.c.b16 %v538, %v537
    %v548 = vpack.c.b16 %v540, %v539
    %557 = vmatpush.bf16.msra.mxu0 %v548
    %558 = vmatpush.bf16.msra.mxu0 %v547
    %559 = vmatpush.bf16.msra.mxu0 %v546
    %560 = vmatpush.bf16.msra.mxu0 %v545
    %561 = vmatpush.bf16.msra.mxu0 %v544
    %562 = vmatpush.bf16.msra.mxu0 %v543
    %563 = vmatpush.bf16.msra.mxu0 %v542
    %564 = vmatpush.bf16.msra.mxu0 %v541
    %565 = vmatmul.bf16.gmra.mxu0 %v503
    %v566 = vpop.f32.mrf.mxu0
    %v567 = vadd.f32 %v507, %v566
    %v568 = vpop.f32.mrf.mxu0
    %569 = vdwg.mxu0
    %v570 = vtanh.pop %v567
    %s571 = scalar_lea.vmem [#allocation2], 384
    %v572 = vld [vmem:[%s571] sm:$0xf]
    %v573 = vld [vmem:[%s571 + $0x4] sm:$0xf]
    %v574 = vld [vmem:[%s571 + $0x8] sm:$0xf]
    %v575 = vld [vmem:[%s571 + $0xc] sm:$0xf]
    %v576 = vld [vmem:[%s571 + $0x10] sm:$0xf]
    %v577 = vld [vmem:[%s571 + $0x14] sm:$0xf]
    %v578 = vld [vmem:[%s571 + $0x18] sm:$0xf]
    %v579 = vld [vmem:[%s571 + $0x1c] sm:$0xf]
    %v580 = vld [vmem:[%s571 + $0x20] sm:$0xf]
    %v581 = vld [vmem:[%s571 + $0x24] sm:$0xf]
    %v582 = vld [vmem:[%s571 + $0x28] sm:$0xf]
    %v583 = vld [vmem:[%s571 + $0x2c] sm:$0xf]
    %v584 = vld [vmem:[%s571 + $0x30] sm:$0xf]
    %v585 = vld [vmem:[%s571 + $0x34] sm:$0xf]
    %v586 = vld [vmem:[%s571 + $0x38] sm:$0xf]
    %v587 = vld [vmem:[%s571 + $0x3c] sm:$0xf]
    %v588 = vpack.c.bf16 %v570, %v570
    %s589 = scalar_lea.vmem %s2, 6
    %v590 = vld [vmem:[%s589] sm:$0x1]
    %v592 = vperm.slane %v590, 0
    %v610 = vunpack.c.l.b16 %v572
    %v611 = vunpack.c.l.b16 %v573
    %v612 = vunpack.c.l.b16 %v574
    %v613 = vunpack.c.l.b16 %v575
    %v614 = vunpack.c.l.b16 %v576
    %v615 = vunpack.c.l.b16 %v577
    %v616 = vunpack.c.l.b16 %v578
    %v617 = vunpack.c.l.b16 %v579
    %v618 = vunpack.c.l.b16 %v580
    %v619 = vunpack.c.l.b16 %v581
    %v620 = vunpack.c.l.b16 %v582
    %v621 = vunpack.c.l.b16 %v583
    %v622 = vunpack.c.l.b16 %v584
    %v623 = vunpack.c.l.b16 %v585
    %v624 = vunpack.c.l.b16 %v586
    %v625 = vunpack.c.l.b16 %v587
    %v626 = vpack.c.b16 %v611, %v610
    %v627 = vpack.c.b16 %v613, %v612
    %v628 = vpack.c.b16 %v615, %v614
    %v629 = vpack.c.b16 %v617, %v616
    %v630 = vpack.c.b16 %v619, %v618
    %v631 = vpack.c.b16 %v621, %v620
    %v632 = vpack.c.b16 %v623, %v622
    %v633 = vpack.c.b16 %v625, %v624
    %642 = vmatpush.bf16.msra.mxu0 %v633
    %643 = vmatpush.bf16.msra.mxu0 %v632
    %644 = vmatpush.bf16.msra.mxu0 %v631
    %645 = vmatpush.bf16.msra.mxu0 %v630
    %646 = vmatpush.bf16.msra.mxu0 %v629
    %647 = vmatpush.bf16.msra.mxu0 %v628
    %648 = vmatpush.bf16.msra.mxu0 %v627
    %649 = vmatpush.bf16.msra.mxu0 %v626
    %650 = vmatmul.bf16.gmra.mxu0 %v588
    %v651 = vpop.f32.mrf.mxu0
    %v652 = vadd.f32 %v592, %v651
    %v653 = vpop.f32.mrf.mxu0
    %654 = vdwg.mxu0
    %v655 = vtanh.pop %v652
    %s656 = scalar_lea.vmem [#allocation2], 448
    %v657 = vld [vmem:[%s656] sm:$0xf]
    %v658 = vld [vmem:[%s656 + $0x4] sm:$0xf]
    %v659 = vld [vmem:[%s656 + $0x8] sm:$0xf]
    %v660 = vld [vmem:[%s656 + $0xc] sm:$0xf]
    %v661 = vld [vmem:[%s656 + $0x10] sm:$0xf]
    %v662 = vld [vmem:[%s656 + $0x14] sm:$0xf]
    %v663 = vld [vmem:[%s656 + $0x18] sm:$0xf]
    %v664 = vld [vmem:[%s656 + $0x1c] sm:$0xf]
    %v665 = vld [vmem:[%s656 + $0x20] sm:$0xf]
    %v666 = vld [vmem:[%s656 + $0x24] sm:$0xf]
    %v667 = vld [vmem:[%s656 + $0x28] sm:$0xf]
    %v668 = vld [vmem:[%s656 + $0x2c] sm:$0xf]
    %v669 = vld [vmem:[%s656 + $0x30] sm:$0xf]
    %v670 = vld [vmem:[%s656 + $0x34] sm:$0xf]
    %v671 = vld [vmem:[%s656 + $0x38] sm:$0xf]
    %v672 = vld [vmem:[%s656 + $0x3c] sm:$0xf]
    %v673 = vpack.c.bf16 %v655, %v655
    %s674 = scalar_lea.vmem %s2, 7
    %v675 = vld [vmem:[%s674] sm:$0x1]
    %v677 = vperm.slane %v675, 0
    %v695 = vunpack.c.l.b16 %v657
    %v696 = vunpack.c.l.b16 %v658
    %v697 = vunpack.c.l.b16 %v659
    %v698 = vunpack.c.l.b16 %v660
    %v699 = vunpack.c.l.b16 %v661
    %v700 = vunpack.c.l.b16 %v662
    %v701 = vunpack.c.l.b16 %v663
    %v702 = vunpack.c.l.b16 %v664
    %v703 = vunpack.c.l.b16 %v665
    %v704 = vunpack.c.l.b16 %v666
    %v705 = vunpack.c.l.b16 %v667
    %v706 = vunpack.c.l.b16 %v668
    %v707 = vunpack.c.l.b16 %v669
    %v708 = vunpack.c.l.b16 %v670
    %v709 = vunpack.c.l.b16 %v671
    %v710 = vunpack.c.l.b16 %v672
    %v711 = vpack.c.b16 %v696, %v695
    %v712 = vpack.c.b16 %v698, %v697
    %v713 = vpack.c.b16 %v700, %v699
    %v714 = vpack.c.b16 %v702, %v701
    %v715 = vpack.c.b16 %v704, %v703
    %v716 = vpack.c.b16 %v706, %v705
    %v717 = vpack.c.b16 %v708, %v707
    %v718 = vpack.c.b16 %v710, %v709
    %727 = vmatpush.bf16.msra.mxu0 %v718
    %728 = vmatpush.bf16.msra.mxu0 %v717
    %729 = vmatpush.bf16.msra.mxu0 %v716
    %730 = vmatpush.bf16.msra.mxu0 %v715
    %731 = vmatpush.bf16.msra.mxu0 %v714
    %732 = vmatpush.bf16.msra.mxu0 %v713
    %733 = vmatpush.bf16.msra.mxu0 %v712
    %734 = vmatpush.bf16.msra.mxu0 %v711
    %735 = vmatmul.bf16.gmra.mxu0 %v673
    %v736 = vpop.f32.mrf.mxu0
    %v737 = vadd.f32 %v677, %v736
    %v738 = vpop.f32.mrf.mxu0
    %739 = vdwg.mxu0
    %v740 = vtanh.pop %v737
    %741 = vst [vmem:[%s3] sm:$0xff] %v740
    // Predicated region
    $region18: #{_forward_jit.1} parent=1 // pred_check
      _
    $region19: #{_forward_jit.1} parent=1 // pred_check_branch
      %743 = sbr.rel (0) target = $region21
    $region20: #{_forward_jit.1} parent=1 // pred_region
      _
    $region21: #{_forward_jit.1} parent=1 // pred_fallthru
      _
    // Predicated region
    $region22: #{_forward_jit.1} parent=1 // pred_check
      _
    $region23: #{_forward_jit.1} parent=1 // pred_check_branch
      %745 = sbr.rel (0) target = $region25
    $region24: #{_forward_jit.1} parent=1 // pred_region
      _
    $region25: #{_forward_jit.1} parent=1 // pred_fallthru
      _
    %746 = vsyncpa [#allocation3], 1

</llo_original>
